<compile_context>
chip_gen: v7x
topology: tpu7x:2x2x1
jax: 0.10.0
libtpu: 0.0.40
codegen_flags: <defaults>
</compile_context>

<pallas_src>
import jax
import jax.numpy as jnp
from jax.experimental import pallas as pl
from jax.experimental.pallas import tpu as pltpu


_LATENT = 10
_DEC_OUT = 8 * 3                 # decoder output width (24)
_MU_OFF = _DEC_OUT               # packed-output column of z_mu (24)
_SIG_OFF = _DEC_OUT + _LATENT    # packed-output column of z_sigma (34)
_OUT_W = _DEC_OUT + 2 * _LATENT  # real packed output width (44)
_PAD = 128                       # uniform lane width for activations / weight pages
_N_LAYERS = 7


def _round_up(x, m):
    return (x + m - 1) // m * m


# --------------------------------------------------------------------------- kernel


def _vae_body(x, mult, w_ref, b_ref, out_ref):
    """All operands are zero-padded to 128 lanes: every matmul is a clean
    (TB,128)x(128,128) MXU tile and every vector op / store is unmasked.

    Layer slab map:
      0 enc1    1 enc2    2 fused [z_mu | z_sigma] head
      3 reparam-folded dec1 (W_dec1 stacked twice along the contracting dim)
      4 dec2    5 dec3 -> out cols 0:24    6 identity scatter head -> out cols 24:44
    """
    b_all = b_ref[...]                                        # (7, 128), tiny

    def lin(i, h, bias=True):
        acc = jnp.dot(h, w_ref[i], preferred_element_type=jnp.float32)
        return (acc + b_all[i:i + 1, :]) if bias else acc

    h = jnp.maximum(lin(0, x), 0.0)                           # enc1 + ReLU
    h = jnp.maximum(lin(1, h), 0.0)                           # enc2 + ReLU
    head = lin(2, h)                                          # [mu | sigma | 0...]

    # reparameterization folded into dec1:
    #   z @ W_dec1 == (head * [1..1 | eps | 0..0]) @ [[W_dec1]; [W_dec1]]
    z = head * mult
    d = jnp.maximum(lin(3, z), 0.0)                           # dec1 + ReLU
    d = jnp.maximum(lin(4, d), 0.0)                           # dec2 + ReLU

    # packed output: cols 0:24 = decoded, 24:34 = mu, 34:44 = sigma, rest 0
    out = lin(5, d) + lin(6, head, bias=False)
    out_ref[...] = out.astype(out_ref.dtype)


def _vae_kernel_train(x_ref, m_ref, w_ref, b_ref, out_ref):
    _vae_body(x_ref[...], m_ref[...], w_ref, b_ref, out_ref)


def _vae_kernel_test(x_ref, w_ref, b_ref, out_ref):
    # testing: z = mu  ->  multiplier = [1]*10 | zeros  (compile-time constant)
    lane = jax.lax.broadcasted_iota(jnp.int32, (1, _PAD), 1)
    mult = (lane < _LATENT).astype(jnp.float32)
    _vae_body(x_ref[...], mult, w_ref, b_ref, out_ref)


# --------------------------------------------------------------------------- params


def init_vae_params(key, input_size):
    """Deterministic parameter init (shapes match the PyTorch module).
    Weights are stored transposed relative to PyTorch: (in_features, out_features)."""
    dims = [
        ("enc1", input_size, 60),
        ("enc2", 60, 20),
        ("z_mu", 20, _LATENT),
        ("z_sigma", 20, _LATENT),
        ("dec1", _LATENT, 20),
        ("dec2", 20, 60),
        ("dec3", 60, _DEC_OUT),
    ]
    params = {}
    for name, fan_in, fan_out in dims:
        key, kw, kb = jax.random.split(key, 3)
        bound = 1.0 / jnp.sqrt(jnp.float32(fan_in))
        w = jax.random.uniform(kw, (fan_in, fan_out), jnp.float32, -bound, bound)
        b = jax.random.uniform(kb, (1, fan_out), jnp.float32, -bound, bound)
        params[name] = (w, b)
    return params


def pack_vae_params(params, input_size):
    """Pack all layer weights into one (7, 128, 128) slab and biases into (7, 128)."""
    if input_size > _PAD:
        raise ValueError("input_size must be <= 128")
    W = jnp.zeros((_N_LAYERS, _PAD, _PAD), jnp.float32)
    B = jnp.zeros((_N_LAYERS, _PAD), jnp.float32)

    w, b = params["enc1"]
    W = W.at[0, :input_size, :60].set(w); B = B.at[0, :60].set(b[0])
    w, b = params["enc2"]
    W = W.at[1, :60, :20].set(w); B = B.at[1, :20].set(b[0])

    # 2: fused [z_mu | z_sigma] head
    wmu, bmu = params["z_mu"]; wsig, bsig = params["z_sigma"]
    W = W.at[2, :20, :_LATENT].set(wmu)
    W = W.at[2, :20, _LATENT:2 * _LATENT].set(wsig)
    B = B.at[2, :_LATENT].set(bmu[0])
    B = B.at[2, _LATENT:2 * _LATENT].set(bsig[0])

    # 3: reparam-folded dec1 -> W_dec1 stacked twice on the contracting dim
    w, b = params["dec1"]                                    # (10, 20)
    W = W.at[3, :_LATENT, :20].set(w)
    W = W.at[3, _LATENT:2 * _LATENT, :20].set(w)
    B = B.at[3, :20].set(b[0])

    w, b = params["dec2"]
    W = W.at[4, :20, :60].set(w); B = B.at[4, :60].set(b[0])
    w, b = params["dec3"]
    W = W.at[5, :60, :_DEC_OUT].set(w); B = B.at[5, :_DEC_OUT].set(b[0])

    # 6: identity scatter -> places [mu | sigma] into output columns 24:44
    W = W.at[6, :2 * _LATENT, _MU_OFF:_MU_OFF + 2 * _LATENT].set(
        jnp.eye(2 * _LATENT, dtype=jnp.float32))
    return W, B


# --------------------------------------------------------------------------- forward


def _choose_tile(batch, block_rows):
    if batch <= 256:
        return _round_up(max(batch, 1), 8)
    # >= 2 grid steps (v7x megacore), tiles a multiple of 256, capped by block_rows
    half = _round_up((batch + 1) // 2, 256)
    return max(256, min(_round_up(block_rows, 256), half))


def vae_forward(w_slab, b_slab, x, epsilon=None, mode="training", block_rows=2048):
    """VAE forward pass as a single batch-tiled Pallas TPU kernel.

    Returns (decoded (B, 24), z_mu (B, 10), z_sigma (B, 10))."""
    if mode not in ("training", "testing"):
        raise ValueError(f"unknown mode: {mode}")
    training = mode == "training"
    if training and epsilon is None:
        raise ValueError("training mode requires epsilon")

    batch, input_size = x.shape
    if input_size > _PAD:
        raise ValueError("input_size must be <= 128")

    tb = _choose_tile(batch, block_rows)
    padded = _round_up(batch, tb)
    grid = (padded // tb,)

    # lane-pad x into a (padded, 128) slab
    x_pad = jnp.zeros((padded, _PAD), jnp.float32).at[:batch, :input_size].set(
        x.astype(jnp.float32))

    io_spec = pl.BlockSpec((tb, _PAD), lambda i: (i, 0))
    w_spec = pl.BlockSpec((_N_LAYERS, _PAD, _PAD), lambda i: (0, 0, 0))  # VMEM-resident
    b_spec = pl.BlockSpec((_N_LAYERS, _PAD), lambda i: (0, 0))

    n_streams = 3 if training else 2
    cost = pl.CostEstimate(
        flops=2 * padded * _N_LAYERS * _PAD * _PAD,
        transcendentals=0,
        bytes_accessed=4 * (n_streams * padded * _PAD
                            + int(w_slab.size) + int(b_slab.size)))
    compiler_params = pltpu.CompilerParams(
        dimension_semantics=("parallel",),
        vmem_limit_bytes=32 * 1024 * 1024,   # safe on v7x (64 MiB physical VMEM)
    )

    if training:
        # reparam multiplier: cols 0:10 = 1, cols 10:20 = eps, rest 0
        mult = jnp.zeros((padded, _PAD), jnp.float32)
        mult = mult.at[:, :_LATENT].set(1.0)
        mult = mult.at[:batch, _LATENT:2 * _LATENT].set(epsilon.astype(jnp.float32))
        kernel = _vae_kernel_train
        inputs = (x_pad, mult, w_slab, b_slab)
        in_specs = [io_spec, io_spec, w_spec, b_spec]
    else:
        kernel = _vae_kernel_test
        inputs = (x_pad, w_slab, b_slab)
        in_specs = [io_spec, w_spec, b_spec]

    out = pl.pallas_call(
        kernel,
        grid=grid,
        in_specs=in_specs,
        out_specs=io_spec,
        out_shape=jax.ShapeDtypeStruct((padded, _PAD), jnp.float32),
        compiler_params=compiler_params,
        cost_estimate=cost,
    )(*inputs)

    decoded = out[:batch, :_DEC_OUT]
    z_mu = out[:batch, _MU_OFF:_MU_OFF + _LATENT]
    z_sigma = out[:batch, _SIG_OFF:_SIG_OFF + _LATENT]
    return decoded, z_mu, z_sigma


# --------------------------------------------------------------------------- demo


if __name__ == "__main__":
    input_size = 8 * 3   # Necker-cube vertex encoding (matches decoder output width)
    batch = 8

    key = jax.random.PRNGKey(0)
    key, kx, keps, kparams = jax.random.split(key, 4)

    params = init_vae_params(kparams, input_size)
    w_slab, b_slab = pack_vae_params(params, input_size)

    x = jax.random.normal(kx, (batch, input_size), jnp.float32)
    epsilon = jax.random.normal(keps, (batch, _LATENT), jnp.float32)  # torch.randn_like(z_sigma)

    # pure-JAX reference
    def ref_forward(params, x, eps, training):
        def lin(n, h):
            w, b = params[n]
            return h @ w + b
        h = jnp.maximum(lin("enc1", x), 0.0)
        h = jnp.maximum(lin("enc2", h), 0.0)
        mu = lin("z_mu", h)
        sig = lin("z_sigma", h)
        z = mu + sig * eps if training else mu
        d = jnp.maximum(lin("dec1", z), 0.0)
        d = jnp.maximum(lin("dec2", d), 0.0)
        return lin("dec3", d), mu, sig

    # training mode
    decoded, z_mu, z_sigma = vae_forward(w_slab, b_slab, x, epsilon, mode="training")
    jax.block_until_ready((decoded, z_mu, z_sigma))
    rd, rmu, rsig = ref_forward(params, x, epsilon, True)
    assert decoded.shape == (batch, _DEC_OUT)
    assert z_mu.shape == (batch, _LATENT) and z_sigma.shape == (batch, _LATENT)
    assert jnp.allclose(decoded, rd, atol=1e-4), "decoded mismatch (training)"
    assert jnp.allclose(z_mu, rmu, atol=1e-4), "z_mu mismatch (training)"
    assert jnp.allclose(z_sigma, rsig, atol=1e-4), "z_sigma mismatch (training)"

    # testing mode (no epsilon input / DMA at all)
    dec_t, mu_t, sig_t = vae_forward(w_slab, b_slab, x, mode="testing")
    jax.block_until_ready((dec_t, mu_t, sig_t))
    rdt, rmut, rsigt = ref_forward(params, x, None, False)
    assert jnp.allclose(dec_t, rdt, atol=1e-4), "decoded mismatch (testing)"
    assert jnp.allclose(mu_t, rmut, atol=1e-4), "z_mu mismatch (testing)"
    assert jnp.allclose(sig_t, rsigt, atol=1e-4), "z_sigma mismatch (testing)"

    # larger batch exercises batch padding + multi-step ("parallel") grid (tb=256, grid=2)
    batch2 = 300
    key, kx2, ke2 = jax.random.split(key, 3)
    x2 = jax.random.normal(kx2, (batch2, input_size), jnp.float32)
    e2 = jax.random.normal(ke2, (batch2, _LATENT), jnp.float32)
    d2, m2, s2 = vae_forward(w_slab, b_slab, x2, e2, mode="training")
    jax.block_until_ready((d2, m2, s2))
    rd2, rm2, rs2 = ref_forward(params, x2, e2, True)
    assert jnp.allclose(d2, rd2, atol=1e-4), "decoded mismatch (batch=300)"
    assert jnp.allclose(m2, rm2, atol=1e-4), "z_mu mismatch (batch=300)"
    assert jnp.allclose(s2, rs2, atol=1e-4), "z_sigma mismatch (batch=300)"

    # NOTE: z_sigma is used raw as the multiplicative scale (no exp/softplus),
    # faithfully matching the PyTorch module; epsilon is an explicit input
    # (the PyTorch module draws it internally with torch.randn_like).
    print("KERNEL_OK")
</pallas_src>

<mosaic_0001>
module attributes {stable_mosaic.version = 11 : i64} {
  func.func @_vae_kernel_train(%arg0: i32, %arg1: memref<8x128xf32, #tpu.memory_space<vmem>>, %arg2: memref<8x128xf32, #tpu.memory_space<vmem>>, %arg3: memref<7x128x128xf32, #tpu.memory_space<vmem>>, %arg4: memref<7x128xf32, #tpu.memory_space<vmem>>, %arg5: memref<8x128xf32, #tpu.memory_space<vmem>>) attributes {dimension_semantics = [#tpu.dimension_semantics<parallel>], iteration_bounds = array<i64: 1>, scalar_prefetch = 0 : i64, scratch_operands = 0 : i64, tpu.core_type = #tpu.core_type<tc>, window_params = [{transform_indices = @transform_0, window_bounds = array<i64: 8, 128>}, {transform_indices = @transform_1, window_bounds = array<i64: 8, 128>}, {pipeline_mode = #tpu.pipeline_mode<synchronous>, transform_indices = @transform_2, window_bounds = array<i64: 7, 128, 128>}, {pipeline_mode = #tpu.pipeline_mode<synchronous>, transform_indices = @transform_3, window_bounds = array<i64: 7, 128>}, {transform_indices = @transform_4, window_bounds = array<i64: 8, 128>}]} {
    %c0 = arith.constant 0 : index
    %c0_0 = arith.constant 0 : index
    %0 = vector.load %arg1[%c0, %c0_0] : memref<8x128xf32, #tpu.memory_space<vmem>>, vector<8x128xf32>
    %c0_1 = arith.constant 0 : index
    %c0_2 = arith.constant 0 : index
    %1 = vector.load %arg2[%c0_1, %c0_2] : memref<8x128xf32, #tpu.memory_space<vmem>>, vector<8x128xf32>
    %c0_3 = arith.constant 0 : index
    %c0_4 = arith.constant 0 : index
    %2 = vector.load %arg4[%c0_3, %c0_4] : memref<7x128xf32, #tpu.memory_space<vmem>>, vector<7x128xf32>
    %c0_5 = arith.constant 0 : index
    %c0_6 = arith.constant 0 : index
    %c0_7 = arith.constant 0 : index
    %3 = vector.load %arg3[%c0_5, %c0_6, %c0_7] : memref<7x128x128xf32, #tpu.memory_space<vmem>>, vector<1x128x128xf32>
    %4 = vector.shape_cast %3 : vector<1x128x128xf32> to vector<128x128xf32>
    %cst = arith.constant dense<0.000000e+00> : vector<8x128xf32>
    %5 = tpu.matmul %0, %4, %cst {dimension_numbers = #tpu.dot_dimension_numbers<[1], [0], [0], [1], [0, 0, 1, 1], [], []>} : vector<8x128xf32>, vector<128x128xf32>, vector<8x128xf32> -> vector<8x128xf32>
    %6 = vector.extract_strided_slice %2 {offsets = [0, 0], sizes = [1, 128], strides = [1, 1]} : vector<7x128xf32> to vector<1x128xf32>
    %7 = vector.broadcast %6 : vector<1x128xf32> to vector<8x128xf32>
    %8 = arith.addf %5, %7 : vector<8x128xf32>
    %cst_8 = arith.constant 0.000000e+00 : f32
    %9 = vector.broadcast %cst_8 : f32 to vector<8x128xf32>
    %10 = arith.maximumf %8, %9 : vector<8x128xf32>
    %c1 = arith.constant 1 : index
    %c0_9 = arith.constant 0 : index
    %c0_10 = arith.constant 0 : index
    %11 = vector.load %arg3[%c1, %c0_9, %c0_10] : memref<7x128x128xf32, #tpu.memory_space<vmem>>, vector<1x128x128xf32>
    %12 = vector.shape_cast %11 : vector<1x128x128xf32> to vector<128x128xf32>
    %cst_11 = arith.constant dense<0.000000e+00> : vector<8x128xf32>
    %13 = tpu.matmul %10, %12, %cst_11 {dimension_numbers = #tpu.dot_dimension_numbers<[1], [0], [0], [1], [0, 0, 1, 1], [], []>} : vector<8x128xf32>, vector<128x128xf32>, vector<8x128xf32> -> vector<8x128xf32>
    %14 = vector.extract_strided_slice %2 {offsets = [1, 0], sizes = [1, 128], strides = [1, 1]} : vector<7x128xf32> to vector<1x128xf32>
    %15 = vector.broadcast %14 : vector<1x128xf32> to vector<8x128xf32>
    %16 = arith.addf %13, %15 : vector<8x128xf32>
    %cst_12 = arith.constant 0.000000e+00 : f32
    %17 = vector.broadcast %cst_12 : f32 to vector<8x128xf32>
    %18 = arith.maximumf %16, %17 : vector<8x128xf32>
    %c2 = arith.constant 2 : index
    %c0_13 = arith.constant 0 : index
    %c0_14 = arith.constant 0 : index
    %19 = vector.load %arg3[%c2, %c0_13, %c0_14] : memref<7x128x128xf32, #tpu.memory_space<vmem>>, vector<1x128x128xf32>
    %20 = vector.shape_cast %19 : vector<1x128x128xf32> to vector<128x128xf32>
    %cst_15 = arith.constant dense<0.000000e+00> : vector<8x128xf32>
    %21 = tpu.matmul %18, %20, %cst_15 {dimension_numbers = #tpu.dot_dimension_numbers<[1], [0], [0], [1], [0, 0, 1, 1], [], []>} : vector<8x128xf32>, vector<128x128xf32>, vector<8x128xf32> -> vector<8x128xf32>
    %22 = vector.extract_strided_slice %2 {offsets = [2, 0], sizes = [1, 128], strides = [1, 1]} : vector<7x128xf32> to vector<1x128xf32>
    %23 = vector.broadcast %22 : vector<1x128xf32> to vector<8x128xf32>
    %24 = arith.addf %21, %23 : vector<8x128xf32>
    %25 = arith.mulf %24, %1 : vector<8x128xf32>
    %c3 = arith.constant 3 : index
    %c0_16 = arith.constant 0 : index
    %c0_17 = arith.constant 0 : index
    %26 = vector.load %arg3[%c3, %c0_16, %c0_17] : memref<7x128x128xf32, #tpu.memory_space<vmem>>, vector<1x128x128xf32>
    %27 = vector.shape_cast %26 : vector<1x128x128xf32> to vector<128x128xf32>
    %cst_18 = arith.constant dense<0.000000e+00> : vector<8x128xf32>
    %28 = tpu.matmul %25, %27, %cst_18 {dimension_numbers = #tpu.dot_dimension_numbers<[1], [0], [0], [1], [0, 0, 1, 1], [], []>} : vector<8x128xf32>, vector<128x128xf32>, vector<8x128xf32> -> vector<8x128xf32>
    %29 = vector.extract_strided_slice %2 {offsets = [3, 0], sizes = [1, 128], strides = [1, 1]} : vector<7x128xf32> to vector<1x128xf32>
    %30 = vector.broadcast %29 : vector<1x128xf32> to vector<8x128xf32>
    %31 = arith.addf %28, %30 : vector<8x128xf32>
    %cst_19 = arith.constant 0.000000e+00 : f32
    %32 = vector.broadcast %cst_19 : f32 to vector<8x128xf32>
    %33 = arith.maximumf %31, %32 : vector<8x128xf32>
    %c4 = arith.constant 4 : index
    %c0_20 = arith.constant 0 : index
    %c0_21 = arith.constant 0 : index
    %34 = vector.load %arg3[%c4, %c0_20, %c0_21] : memref<7x128x128xf32, #tpu.memory_space<vmem>>, vector<1x128x128xf32>
    %35 = vector.shape_cast %34 : vector<1x128x128xf32> to vector<128x128xf32>
    %cst_22 = arith.constant dense<0.000000e+00> : vector<8x128xf32>
    %36 = tpu.matmul %33, %35, %cst_22 {dimension_numbers = #tpu.dot_dimension_numbers<[1], [0], [0], [1], [0, 0, 1, 1], [], []>} : vector<8x128xf32>, vector<128x128xf32>, vector<8x128xf32> -> vector<8x128xf32>
    %37 = vector.extract_strided_slice %2 {offsets = [4, 0], sizes = [1, 128], strides = [1, 1]} : vector<7x128xf32> to vector<1x128xf32>
    %38 = vector.broadcast %37 : vector<1x128xf32> to vector<8x128xf32>
    %39 = arith.addf %36, %38 : vector<8x128xf32>
    %cst_23 = arith.constant 0.000000e+00 : f32
    %40 = vector.broadcast %cst_23 : f32 to vector<8x128xf32>
    %41 = arith.maximumf %39, %40 : vector<8x128xf32>
    %c5 = arith.constant 5 : index
    %c0_24 = arith.constant 0 : index
    %c0_25 = arith.constant 0 : index
    %42 = vector.load %arg3[%c5, %c0_24, %c0_25] : memref<7x128x128xf32, #tpu.memory_space<vmem>>, vector<1x128x128xf32>
    %43 = vector.shape_cast %42 : vector<1x128x128xf32> to vector<128x128xf32>
    %cst_26 = arith.constant dense<0.000000e+00> : vector<8x128xf32>
    %44 = tpu.matmul %41, %43, %cst_26 {dimension_numbers = #tpu.dot_dimension_numbers<[1], [0], [0], [1], [0, 0, 1, 1], [], []>} : vector<8x128xf32>, vector<128x128xf32>, vector<8x128xf32> -> vector<8x128xf32>
    %45 = vector.extract_strided_slice %2 {offsets = [5, 0], sizes = [1, 128], strides = [1, 1]} : vector<7x128xf32> to vector<1x128xf32>
    %46 = vector.broadcast %45 : vector<1x128xf32> to vector<8x128xf32>
    %47 = arith.addf %44, %46 : vector<8x128xf32>
    %c6 = arith.constant 6 : index
    %c0_27 = arith.constant 0 : index
    %c0_28 = arith.constant 0 : index
    %48 = vector.load %arg3[%c6, %c0_27, %c0_28] : memref<7x128x128xf32, #tpu.memory_space<vmem>>, vector<1x128x128xf32>
    %49 = vector.shape_cast %48 : vector<1x128x128xf32> to vector<128x128xf32>
    %cst_29 = arith.constant dense<0.000000e+00> : vector<8x128xf32>
    %50 = tpu.matmul %24, %49, %cst_29 {dimension_numbers = #tpu.dot_dimension_numbers<[1], [0], [0], [1], [0, 0, 1, 1], [], []>} : vector<8x128xf32>, vector<128x128xf32>, vector<8x128xf32> -> vector<8x128xf32>
    %51 = arith.addf %47, %50 : vector<8x128xf32>
    %c0_30 = arith.constant 0 : index
    %c0_31 = arith.constant 0 : index
    %52 = vector.load %arg5[%c0_30, %c0_31] : memref<8x128xf32, #tpu.memory_space<vmem>>, vector<8x128xf32>
    tpu.vector_store %arg5[%c0_30, %c0_31], %51 {strides = array<i32>} : memref<8x128xf32, #tpu.memory_space<vmem>>, vector<8x128xf32>,
    return
  }
  func.func @transform_0(%arg0: i32) -> (i32, i32) {
    %c0_i32 = arith.constant 0 : i32
    %c0_i32_0 = arith.constant 0 : i32
    return %arg0, %c0_i32 : i32, i32
  }
  func.func @transform_1(%arg0: i32) -> (i32, i32) {
    %c0_i32 = arith.constant 0 : i32
    %c0_i32_0 = arith.constant 0 : i32
    return %arg0, %c0_i32 : i32, i32
  }
  func.func @transform_2(%arg0: i32) -> (i32, i32, i32) {
    %c0_i32 = arith.constant 0 : i32
    %c0_i32_0 = arith.constant 0 : i32
    %c0_i32_1 = arith.constant 0 : i32
    %c0_i32_2 = arith.constant 0 : i32
    return %c0_i32, %c0_i32_0, %c0_i32_1 : i32, i32, i32
  }
  func.func @transform_3(%arg0: i32) -> (i32, i32) {
    %c0_i32 = arith.constant 0 : i32
    %c0_i32_0 = arith.constant 0 : i32
    %c0_i32_1 = arith.constant 0 : i32
    return %c0_i32, %c0_i32_0 : i32, i32
  }
  func.func @transform_4(%arg0: i32) -> (i32, i32) {
    %c0_i32 = arith.constant 0 : i32
    %c0_i32_0 = arith.constant 0 : i32
    return %arg0, %c0_i32 : i32, i32
  }
}

</mosaic_0001>

<llo_original>
// kernel: tpu_custom_call.1
$region0: #{tpu_custom_call.1}
  #allocation0 [shape = 'u32[]', space=smem, size = 0x4, offset = 0x4, fixed_abs, tag = 'smem constant byte address 0x4 - core index']
  #allocation1 [shape = 'u32[144,128]{1,0:T(1,128)}', space=vmem, size = 0x12000, scoped, tag = 'internal scratch']
  %s0 = inlined_call_operand.hbm [shape: f32[8,128], index: 0, kind: input, shape index: {}]
  %s1 = inlined_call_operand.hbm [shape: f32[8,128], index: 1, kind: input, shape index: {}]
  %s2 = inlined_call_operand.hbm [shape: f32[7,128,128], index: 2, kind: input, shape index: {}]
  %s3 = inlined_call_operand.vmem [shape: f32[7,128], index: 3, kind: input, shape index: {}]
  %s4 = inlined_call_operand.hbm [shape: f32[8,128], index: 4, kind: output, shape index: {}]
  %s5 = sld [smem:[#allocation0]]
  $region38: #{tpu_custom_call.1} parent=0
    _
  %s7 = ssub.s32 1, %s5
  %s8 = scalar_select 0, %s7, %s5
  $region1: #{tpu_custom_call.1} parent=0
    #allocation2 [shape = 'u8[4096]{0}', space=vmem, size = 0x1000, scoped, tag = 'input window, operand 0, single buffered']
    #allocation3 [shape = 's32[1]{0}', space=sflag, size = 0x4, scoped, tag = 'scoped memory for tpu_custom_call.1']
    #allocation4 [shape = 's32[1]{0}', space=sflag, size = 0x4, scoped, tag = 'scoped memory for tpu_custom_call.1']
    #allocation5 [shape = 'u8[4096]{0}', space=vmem, size = 0x1000, scoped, tag = 'input window, operand 1, single buffered']
    #allocation6 [shape = 's32[1]{0}', space=sflag, size = 0x4, scoped, tag = 'scoped memory for tpu_custom_call.1']
    #allocation7 [shape = 'u8[458752]{0}', space=vmem, size = 0x70000, scoped, tag = 'input window, operand 2, single buffered']
    #allocation8 [shape = 'u8[4096]{0}', space=vmem, size = 0x1000, scoped, tag = 'output window, operand 0, single buffered']
    %9 = vsyncpa [#allocation3], 0
    %10 = vsyncpa [#allocation6], 0
    %11 = vsyncpa [#allocation4], 0
    // Predicated region
    $region2: #{tpu_custom_call.1} parent=1 // pred_check
      _
    $region3: #{tpu_custom_call.1} parent=1 // pred_check_branch
      %13 = sbr.rel (0) target = $region5
    $region4: #{tpu_custom_call.1} parent=1 // pred_region
      %s15 = ssub.s32 128, 128
      %16 = vsyncadd [#allocation3], %s15
      %s18 = sshll.u32 [#allocation2], 4
      %s19 = int_to_ptr.vmem [resolvable:$true] %s18
      %21 = dma.hbm_to_vmem [thread:$0]  %s0, 128, %s19, [#allocation3]
    $region5: #{tpu_custom_call.1} parent=1 // pred_fallthru
      _
    // Predicated region
    $region6: #{tpu_custom_call.1} parent=1 // pred_check
      _
    $region7: #{tpu_custom_call.1} parent=1 // pred_check_branch
      %23 = sbr.rel (0) target = $region9
    $region8: #{tpu_custom_call.1} parent=1 // pred_region
      %s25 = ssub.s32 128, 128
      %26 = vsyncadd [#allocation6], %s25
      %s28 = sshll.u32 [#allocation5], 4
      %s29 = int_to_ptr.vmem [resolvable:$true] %s28
      %31 = dma.hbm_to_vmem [thread:$0]  %s1, 128, %s29, [#allocation6]
    $region9: #{tpu_custom_call.1} parent=1 // pred_fallthru
      _
    // Predicated region
    $region10: #{tpu_custom_call.1} parent=1 // pred_check
      _
    $region11: #{tpu_custom_call.1} parent=1 // pred_check_branch
      %33 = sbr.rel (0) target = $region13
    $region12: #{tpu_custom_call.1} parent=1 // pred_region
      %s35 = ssub.s32 14336, 14336
      %36 = vsyncadd [#allocation6], %s35
      %s37 = sshll.u32 [#allocation7], 4
      %s38 = int_to_ptr.vmem [resolvable:$true] %s37
      %43 = dma.hbm_to_vmem [thread:$0]  %s2, 14336, %s38, [#allocation6], 128, 128, 8
    $region13: #{tpu_custom_call.1} parent=1 // pred_fallthru
      _
    // Predicated region
    $region14: #{tpu_custom_call.1} parent=1 // pred_check
      _
    $region15: #{tpu_custom_call.1} parent=1 // pred_check_branch
      %45 = sbr.rel (0) target = $region17
    $region16: #{tpu_custom_call.1} parent=1 // pred_region
      _
    $region17: #{tpu_custom_call.1} parent=1 // pred_fallthru
      _
    // Predicated region
    $region18: #{tpu_custom_call.1} parent=1 // pred_check
      _
    $region19: #{tpu_custom_call.1} parent=1 // pred_check_branch
      %47 = sbr.rel (0) target = $region21
    $region20: #{tpu_custom_call.1} parent=1 // pred_region
      %48 = dma.done [#allocation3], 128
    $region21: #{tpu_custom_call.1} parent=1 // pred_fallthru
      _
    // Predicated region
    $region22: #{tpu_custom_call.1} parent=1 // pred_check
      _
    $region23: #{tpu_custom_call.1} parent=1 // pred_check_branch
      %50 = sbr.rel (0) target = $region25
    $region24: #{tpu_custom_call.1} parent=1 // pred_region
      %51 = dma.done [#allocation6], 128
    $region25: #{tpu_custom_call.1} parent=1 // pred_fallthru
      _
    // Predicated region
    $region26: #{tpu_custom_call.1} parent=1 // pred_check
      _
    $region27: #{tpu_custom_call.1} parent=1 // pred_check_branch
      %53 = sbr.rel (0) target = $region29
    $region28: #{tpu_custom_call.1} parent=1 // pred_region
      %54 = dma.done [#allocation6], 14336
    $region29: #{tpu_custom_call.1} parent=1 // pred_fallthru
      _
    %v55 = vld [vmem:[#allocation2] sm:$0xff]
    %v56 = vld [vmem:[#allocation5] sm:$0xff]
    %v57 = vld [vmem:[%s3] sm:$0x7f]
    %v58 = vld [vmem:[#allocation7] sm:$0xff]
    %v59 = vld [vmem:[#allocation7 + $0x8] sm:$0xff]
    %v60 = vld [vmem:[#allocation7 + $0x10] sm:$0xff]
    %v61 = vld [vmem:[#allocation7 + $0x18] sm:$0xff]
    %v62 = vld [vmem:[#allocation7 + $0x20] sm:$0xff]
    %v63 = vld [vmem:[#allocation7 + $0x28] sm:$0xff]
    %v64 = vld [vmem:[#allocation7 + $0x30] sm:$0xff]
    %v65 = vld [vmem:[#allocation7 + $0x38] sm:$0xff]
    %v66 = vld [vmem:[#allocation7 + $0x40] sm:$0xff]
    %v67 = vld [vmem:[#allocation7 + $0x48] sm:$0xff]
    %v68 = vld [vmem:[#allocation7 + $0x50] sm:$0xff]
    %v69 = vld [vmem:[#allocation7 + $0x58] sm:$0xff]
    %v70 = vld [vmem:[#allocation7 + $0x60] sm:$0xff]
    %v71 = vld [vmem:[#allocation7 + $0x68] sm:$0xff]
    %v72 = vld [vmem:[#allocation7 + $0x70] sm:$0xff]
    %v73 = vld [vmem:[#allocation7 + $0x78] sm:$0xff]
    %v74 = vlaneseq
    %v75 = vshrl.u32 %v74, 7
    %v76 = vsub.s32 0, %v75
    %v77 = vrot.slane %v57, %v76
    %78 = vmatprep.subr.mxu0 0.0
    %79 = vmatpush1.msra.mxu0 %v58
    %80 = vmatprep.subr.mxu0 0.0
    %81 = vmatpush1.msra.mxu0 %v59
    %82 = vmatprep.subr.mxu0 0.0
    %83 = vmatpush1.msra.mxu0 %v60
    %84 = vmatprep.subr.mxu0 0.0
    %85 = vmatpush1.msra.mxu0 %v61
    %86 = vmatprep.subr.mxu0 0.0
    %87 = vmatpush1.msra.mxu0 %v62
    %88 = vmatprep.subr.mxu0 0.0
    %89 = vmatpush1.msra.mxu0 %v63
    %90 = vmatprep.subr.mxu0 0.0
    %91 = vmatpush1.msra.mxu0 %v64
    %92 = vmatprep.subr.mxu0 0.0
    %93 = vmatpush1.msra.mxu0 %v65
    %94 = vmatprep.subr.mxu0 0.0
    %95 = vmatpush1.msra.mxu0 %v66
    %96 = vmatprep.subr.mxu0 0.0
    %97 = vmatpush1.msra.mxu0 %v67
    %98 = vmatprep.subr.mxu0 0.0
    %99 = vmatpush1.msra.mxu0 %v68
    %100 = vmatprep.subr.mxu0 0.0
    %101 = vmatpush1.msra.mxu0 %v69
    %102 = vmatprep.subr.mxu0 0.0
    %103 = vmatpush1.msra.mxu0 %v70
    %104 = vmatprep.subr.mxu0 0.0
    %105 = vmatpush1.msra.mxu0 %v71
    %106 = vmatprep.subr.mxu0 0.0
    %107 = vmatpush1.msra.mxu0 %v72
    %108 = vmatprep.subr.mxu0 0.0
    %109 = vmatpush1.msra.mxu0 %v73
    %110 = vmatprep.subr.mxu0 0.0
    %111 = vmatpush1.msra.mxu0 0.0
    %112 = vmatprep.subr.mxu0 0.0
    %113 = vmatpush1.msra.mxu0 0.0
    %114 = vmatprep.subr.mxu0 0.0
    %115 = vmatpush1.msra.mxu0 0.0
    %116 = vmatprep.subr.mxu0 0.0
    %117 = vmatpush1.msra.mxu0 0.0
    %118 = vmatprep.subr.mxu0 0.0
    %119 = vmatpush1.msra.mxu0 0.0
    %120 = vmatprep.subr.mxu0 0.0
    %121 = vmatpush1.msra.mxu0 0.0
    %122 = vmatprep.subr.mxu0 0.0
    %123 = vmatpush1.msra.mxu0 0.0
    %124 = vmatprep.subr.mxu0 0.0
    %125 = vmatpush1.msra.mxu0 0.0
    %126 = vmatprep.subr.mxu0 0.0
    %127 = vmatpush1.msra.mxu0 0.0
    %128 = vmatprep.subr.mxu0 0.0
    %129 = vmatpush1.msra.mxu0 0.0
    %130 = vmatprep.subr.mxu0 0.0
    %131 = vmatpush1.msra.mxu0 0.0
    %132 = vmatprep.subr.mxu0 0.0
    %133 = vmatpush1.msra.mxu0 0.0
    %134 = vmatprep.subr.mxu0 0.0
    %135 = vmatpush1.msra.mxu0 0.0
    %136 = vmatprep.subr.mxu0 0.0
    %137 = vmatpush1.msra.mxu0 0.0
    %138 = vmatprep.subr.mxu0 0.0
    %139 = vmatpush1.msra.mxu0 0.0
    %140 = vmatprep.subr.mxu0 0.0
    %141 = vmatpush1.msra.mxu0 0.0
    %142 = vmatprep.mubr.f32.mxu0 0.0
    %143 = vmatmul.mubr.f32.gmra.mrb[0].mxu0 %v55
    %v144 = vpop.f32.mrb[0].mxu0
    %v145 = vadd.f32 %v77, %v144
    %v146 = vpop.f32.mrb[0].mxu0
    %147 = vdwg.mxu0
    %v148 = vmax.f32 %v145, 0.0
    %s149 = scalar_lea.vmem [#allocation7], 128
    %v150 = vld [vmem:[%s149] sm:$0xff]
    %v151 = vld [vmem:[%s149 + $0x8] sm:$0xff]
    %v152 = vld [vmem:[%s149 + $0x10] sm:$0xff]
    %v153 = vld [vmem:[%s149 + $0x18] sm:$0xff]
    %v154 = vld [vmem:[%s149 + $0x20] sm:$0xff]
    %v155 = vld [vmem:[%s149 + $0x28] sm:$0xff]
    %v156 = vld [vmem:[%s149 + $0x30] sm:$0xff]
    %v157 = vld [vmem:[%s149 + $0x38] sm:$0xff]
    %v158 = vld [vmem:[%s149 + $0x40] sm:$0xff]
    %v159 = vld [vmem:[%s149 + $0x48] sm:$0xff]
    %v160 = vld [vmem:[%s149 + $0x50] sm:$0xff]
    %v161 = vld [vmem:[%s149 + $0x58] sm:$0xff]
    %v162 = vld [vmem:[%s149 + $0x60] sm:$0xff]
    %v163 = vld [vmem:[%s149 + $0x68] sm:$0xff]
    %v164 = vld [vmem:[%s149 + $0x70] sm:$0xff]
    %v165 = vld [vmem:[%s149 + $0x78] sm:$0xff]
    %v166 = vlaneseq
    %v167 = vshrl.u32 %v166, 7
    %v168 = vsub.s32 1, %v167
    %v169 = vrot.slane %v57, %v168
    %170 = vmatprep.subr.mxu0 0.0
    %171 = vmatpush1.msra.mxu0 %v150
    %172 = vmatprep.subr.mxu0 0.0
    %173 = vmatpush1.msra.mxu0 %v151
    %174 = vmatprep.subr.mxu0 0.0
    %175 = vmatpush1.msra.mxu0 %v152
    %176 = vmatprep.subr.mxu0 0.0
    %177 = vmatpush1.msra.mxu0 %v153
    %178 = vmatprep.subr.mxu0 0.0
    %179 = vmatpush1.msra.mxu0 %v154
    %180 = vmatprep.subr.mxu0 0.0
    %181 = vmatpush1.msra.mxu0 %v155
    %182 = vmatprep.subr.mxu0 0.0
    %183 = vmatpush1.msra.mxu0 %v156
    %184 = vmatprep.subr.mxu0 0.0
    %185 = vmatpush1.msra.mxu0 %v157
    %186 = vmatprep.subr.mxu0 0.0
    %187 = vmatpush1.msra.mxu0 %v158
    %188 = vmatprep.subr.mxu0 0.0
    %189 = vmatpush1.msra.mxu0 %v159
    %190 = vmatprep.subr.mxu0 0.0
    %191 = vmatpush1.msra.mxu0 %v160
    %192 = vmatprep.subr.mxu0 0.0
    %193 = vmatpush1.msra.mxu0 %v161
    %194 = vmatprep.subr.mxu0 0.0
    %195 = vmatpush1.msra.mxu0 %v162
    %196 = vmatprep.subr.mxu0 0.0
    %197 = vmatpush1.msra.mxu0 %v163
    %198 = vmatprep.subr.mxu0 0.0
    %199 = vmatpush1.msra.mxu0 %v164
    %200 = vmatprep.subr.mxu0 0.0
    %201 = vmatpush1.msra.mxu0 %v165
    %202 = vmatprep.subr.mxu0 0.0
    %203 = vmatpush1.msra.mxu0 0.0
    %204 = vmatprep.subr.mxu0 0.0
    %205 = vmatpush1.msra.mxu0 0.0
    %206 = vmatprep.subr.mxu0 0.0
    %207 = vmatpush1.msra.mxu0 0.0
    %208 = vmatprep.subr.mxu0 0.0
    %209 = vmatpush1.msra.mxu0 0.0
    %210 = vmatprep.subr.mxu0 0.0
    %211 = vmatpush1.msra.mxu0 0.0
    %212 = vmatprep.subr.mxu0 0.0
    %213 = vmatpush1.msra.mxu0 0.0
    %214 = vmatprep.subr.mxu0 0.0
    %215 = vmatpush1.msra.mxu0 0.0
    %216 = vmatprep.subr.mxu0 0.0
    %217 = vmatpush1.msra.mxu0 0.0
    %218 = vmatprep.subr.mxu0 0.0
    %219 = vmatpush1.msra.mxu0 0.0
    %220 = vmatprep.subr.mxu0 0.0
    %221 = vmatpush1.msra.mxu0 0.0
    %222 = vmatprep.subr.mxu0 0.0
    %223 = vmatpush1.msra.mxu0 0.0
    %224 = vmatprep.subr.mxu0 0.0
    %225 = vmatpush1.msra.mxu0 0.0
    %226 = vmatprep.subr.mxu0 0.0
    %227 = vmatpush1.msra.mxu0 0.0
    %228 = vmatprep.subr.mxu0 0.0
    %229 = vmatpush1.msra.mxu0 0.0
    %230 = vmatprep.subr.mxu0 0.0
    %231 = vmatpush1.msra.mxu0 0.0
    %232 = vmatprep.subr.mxu0 0.0
    %233 = vmatpush1.msra.mxu0 0.0
    %234 = vmatprep.mubr.f32.mxu0 0.0
    %235 = vmatmul.mubr.f32.gmra.mrb[0].mxu0 %v148
    %v236 = vpop.f32.mrb[0].mxu0
    %v237 = vadd.f32 %v169, %v236
    %v238 = vpop.f32.mrb[0].mxu0
    %239 = vdwg.mxu0
    %v240 = vmax.f32 %v237, 0.0
    %s241 = scalar_lea.vmem [#allocation7], 256
    %v242 = vld [vmem:[%s241] sm:$0xff]
    %v243 = vld [vmem:[%s241 + $0x8] sm:$0xff]
    %v244 = vld [vmem:[%s241 + $0x10] sm:$0xff]
    %v245 = vld [vmem:[%s241 + $0x18] sm:$0xff]
    %v246 = vld [vmem:[%s241 + $0x20] sm:$0xff]
    %v247 = vld [vmem:[%s241 + $0x28] sm:$0xff]
    %v248 = vld [vmem:[%s241 + $0x30] sm:$0xff]
    %v249 = vld [vmem:[%s241 + $0x38] sm:$0xff]
    %v250 = vld [vmem:[%s241 + $0x40] sm:$0xff]
    %v251 = vld [vmem:[%s241 + $0x48] sm:$0xff]
    %v252 = vld [vmem:[%s241 + $0x50] sm:$0xff]
    %v253 = vld [vmem:[%s241 + $0x58] sm:$0xff]
    %v254 = vld [vmem:[%s241 + $0x60] sm:$0xff]
    %v255 = vld [vmem:[%s241 + $0x68] sm:$0xff]
    %v256 = vld [vmem:[%s241 + $0x70] sm:$0xff]
    %v257 = vld [vmem:[%s241 + $0x78] sm:$0xff]
    %v258 = vlaneseq
    %v259 = vshrl.u32 %v258, 7
    %v260 = vsub.s32 2, %v259
    %v261 = vrot.slane %v57, %v260
    %262 = vmatprep.subr.mxu0 0.0
    %263 = vmatpush1.msra.mxu0 %v242
    %264 = vmatprep.subr.mxu0 0.0
    %265 = vmatpush1.msra.mxu0 %v243
    %266 = vmatprep.subr.mxu0 0.0
    %267 = vmatpush1.msra.mxu0 %v244
    %268 = vmatprep.subr.mxu0 0.0
    %269 = vmatpush1.msra.mxu0 %v245
    %270 = vmatprep.subr.mxu0 0.0
    %271 = vmatpush1.msra.mxu0 %v246
    %272 = vmatprep.subr.mxu0 0.0
    %273 = vmatpush1.msra.mxu0 %v247
    %274 = vmatprep.subr.mxu0 0.0
    %275 = vmatpush1.msra.mxu0 %v248
    %276 = vmatprep.subr.mxu0 0.0
    %277 = vmatpush1.msra.mxu0 %v249
    %278 = vmatprep.subr.mxu0 0.0
    %279 = vmatpush1.msra.mxu0 %v250
    %280 = vmatprep.subr.mxu0 0.0
    %281 = vmatpush1.msra.mxu0 %v251
    %282 = vmatprep.subr.mxu0 0.0
    %283 = vmatpush1.msra.mxu0 %v252
    %284 = vmatprep.subr.mxu0 0.0
    %285 = vmatpush1.msra.mxu0 %v253
    %286 = vmatprep.subr.mxu0 0.0
    %287 = vmatpush1.msra.mxu0 %v254
    %288 = vmatprep.subr.mxu0 0.0
    %289 = vmatpush1.msra.mxu0 %v255
    %290 = vmatprep.subr.mxu0 0.0
    %291 = vmatpush1.msra.mxu0 %v256
    %292 = vmatprep.subr.mxu0 0.0
    %293 = vmatpush1.msra.mxu0 %v257
    %294 = vmatprep.subr.mxu0 0.0
    %295 = vmatpush1.msra.mxu0 0.0
    %296 = vmatprep.subr.mxu0 0.0
    %297 = vmatpush1.msra.mxu0 0.0
    %298 = vmatprep.subr.mxu0 0.0
    %299 = vmatpush1.msra.mxu0 0.0
    %300 = vmatprep.subr.mxu0 0.0
    %301 = vmatpush1.msra.mxu0 0.0
    %302 = vmatprep.subr.mxu0 0.0
    %303 = vmatpush1.msra.mxu0 0.0
    %304 = vmatprep.subr.mxu0 0.0
    %305 = vmatpush1.msra.mxu0 0.0
    %306 = vmatprep.subr.mxu0 0.0
    %307 = vmatpush1.msra.mxu0 0.0
    %308 = vmatprep.subr.mxu0 0.0
    %309 = vmatpush1.msra.mxu0 0.0
    %310 = vmatprep.subr.mxu0 0.0
    %311 = vmatpush1.msra.mxu0 0.0
    %312 = vmatprep.subr.mxu0 0.0
    %313 = vmatpush1.msra.mxu0 0.0
    %314 = vmatprep.subr.mxu0 0.0
    %315 = vmatpush1.msra.mxu0 0.0
    %316 = vmatprep.subr.mxu0 0.0
    %317 = vmatpush1.msra.mxu0 0.0
    %318 = vmatprep.subr.mxu0 0.0
    %319 = vmatpush1.msra.mxu0 0.0
    %320 = vmatprep.subr.mxu0 0.0
    %321 = vmatpush1.msra.mxu0 0.0
    %322 = vmatprep.subr.mxu0 0.0
    %323 = vmatpush1.msra.mxu0 0.0
    %324 = vmatprep.subr.mxu0 0.0
    %325 = vmatpush1.msra.mxu0 0.0
    %326 = vmatprep.mubr.f32.mxu0 0.0
    %327 = vmatmul.mubr.f32.gmra.mrb[0].mxu0 %v240
    %v328 = vpop.f32.mrb[0].mxu0
    %v329 = vadd.f32 %v261, %v328
    %v330 = vpop.f32.mrb[0].mxu0
    %331 = vdwg.mxu0
    %v332 = vmul.f32 %v329, %v56
    %s333 = scalar_lea.vmem [#allocation7], 384
    %v334 = vld [vmem:[%s333] sm:$0xff]
    %v335 = vld [vmem:[%s333 + $0x8] sm:$0xff]
    %v336 = vld [vmem:[%s333 + $0x10] sm:$0xff]
    %v337 = vld [vmem:[%s333 + $0x18] sm:$0xff]
    %v338 = vld [vmem:[%s333 + $0x20] sm:$0xff]
    %v339 = vld [vmem:[%s333 + $0x28] sm:$0xff]
    %v340 = vld [vmem:[%s333 + $0x30] sm:$0xff]
    %v341 = vld [vmem:[%s333 + $0x38] sm:$0xff]
    %v342 = vld [vmem:[%s333 + $0x40] sm:$0xff]
    %v343 = vld [vmem:[%s333 + $0x48] sm:$0xff]
    %v344 = vld [vmem:[%s333 + $0x50] sm:$0xff]
    %v345 = vld [vmem:[%s333 + $0x58] sm:$0xff]
    %v346 = vld [vmem:[%s333 + $0x60] sm:$0xff]
    %v347 = vld [vmem:[%s333 + $0x68] sm:$0xff]
    %v348 = vld [vmem:[%s333 + $0x70] sm:$0xff]
    %v349 = vld [vmem:[%s333 + $0x78] sm:$0xff]
    %v350 = vlaneseq
    %v351 = vshrl.u32 %v350, 7
    %v352 = vsub.s32 3, %v351
    %v353 = vrot.slane %v57, %v352
    %354 = vmatprep.subr.mxu0 0.0
    %355 = vmatpush1.msra.mxu0 %v334
    %356 = vmatprep.subr.mxu0 0.0
    %357 = vmatpush1.msra.mxu0 %v335
    %358 = vmatprep.subr.mxu0 0.0
    %359 = vmatpush1.msra.mxu0 %v336
    %360 = vmatprep.subr.mxu0 0.0
    %361 = vmatpush1.msra.mxu0 %v337
    %362 = vmatprep.subr.mxu0 0.0
    %363 = vmatpush1.msra.mxu0 %v338
    %364 = vmatprep.subr.mxu0 0.0
    %365 = vmatpush1.msra.mxu0 %v339
    %366 = vmatprep.subr.mxu0 0.0
    %367 = vmatpush1.msra.mxu0 %v340
    %368 = vmatprep.subr.mxu0 0.0
    %369 = vmatpush1.msra.mxu0 %v341
    %370 = vmatprep.subr.mxu0 0.0
    %371 = vmatpush1.msra.mxu0 %v342
    %372 = vmatprep.subr.mxu0 0.0
    %373 = vmatpush1.msra.mxu0 %v343
    %374 = vmatprep.subr.mxu0 0.0
    %375 = vmatpush1.msra.mxu0 %v344
    %376 = vmatprep.subr.mxu0 0.0
    %377 = vmatpush1.msra.mxu0 %v345
    %378 = vmatprep.subr.mxu0 0.0
    %379 = vmatpush1.msra.mxu0 %v346
    %380 = vmatprep.subr.mxu0 0.0
    %381 = vmatpush1.msra.mxu0 %v347
    %382 = vmatprep.subr.mxu0 0.0
    %383 = vmatpush1.msra.mxu0 %v348
    %384 = vmatprep.subr.mxu0 0.0
    %385 = vmatpush1.msra.mxu0 %v349
    %386 = vmatprep.subr.mxu0 0.0
    %387 = vmatpush1.msra.mxu0 0.0
    %388 = vmatprep.subr.mxu0 0.0
    %389 = vmatpush1.msra.mxu0 0.0
    %390 = vmatprep.subr.mxu0 0.0
    %391 = vmatpush1.msra.mxu0 0.0
    %392 = vmatprep.subr.mxu0 0.0
    %393 = vmatpush1.msra.mxu0 0.0
    %394 = vmatprep.subr.mxu0 0.0
    %395 = vmatpush1.msra.mxu0 0.0
    %396 = vmatprep.subr.mxu0 0.0
    %397 = vmatpush1.msra.mxu0 0.0
    %398 = vmatprep.subr.mxu0 0.0
    %399 = vmatpush1.msra.mxu0 0.0
    %400 = vmatprep.subr.mxu0 0.0
    %401 = vmatpush1.msra.mxu0 0.0
    %402 = vmatprep.subr.mxu0 0.0
    %403 = vmatpush1.msra.mxu0 0.0
    %404 = vmatprep.subr.mxu0 0.0
    %405 = vmatpush1.msra.mxu0 0.0
    %406 = vmatprep.subr.mxu0 0.0
    %407 = vmatpush1.msra.mxu0 0.0
    %408 = vmatprep.subr.mxu0 0.0
    %409 = vmatpush1.msra.mxu0 0.0
    %410 = vmatprep.subr.mxu0 0.0
    %411 = vmatpush1.msra.mxu0 0.0
    %412 = vmatprep.subr.mxu0 0.0
    %413 = vmatpush1.msra.mxu0 0.0
    %414 = vmatprep.subr.mxu0 0.0
    %415 = vmatpush1.msra.mxu0 0.0
    %416 = vmatprep.subr.mxu0 0.0
    %417 = vmatpush1.msra.mxu0 0.0
    %418 = vmatprep.mubr.f32.mxu0 0.0
    %419 = vmatmul.mubr.f32.gmra.mrb[0].mxu0 %v332
    %v420 = vpop.f32.mrb[0].mxu0
    %v421 = vadd.f32 %v353, %v420
    %v422 = vpop.f32.mrb[0].mxu0
    %423 = vdwg.mxu0
    %v424 = vmax.f32 %v421, 0.0
    %s425 = scalar_lea.vmem [#allocation7], 512
    %v426 = vld [vmem:[%s425] sm:$0xff]
    %v427 = vld [vmem:[%s425 + $0x8] sm:$0xff]
    %v428 = vld [vmem:[%s425 + $0x10] sm:$0xff]
    %v429 = vld [vmem:[%s425 + $0x18] sm:$0xff]
    %v430 = vld [vmem:[%s425 + $0x20] sm:$0xff]
    %v431 = vld [vmem:[%s425 + $0x28] sm:$0xff]
    %v432 = vld [vmem:[%s425 + $0x30] sm:$0xff]
    %v433 = vld [vmem:[%s425 + $0x38] sm:$0xff]
    %v434 = vld [vmem:[%s425 + $0x40] sm:$0xff]
    %v435 = vld [vmem:[%s425 + $0x48] sm:$0xff]
    %v436 = vld [vmem:[%s425 + $0x50] sm:$0xff]
    %v437 = vld [vmem:[%s425 + $0x58] sm:$0xff]
    %v438 = vld [vmem:[%s425 + $0x60] sm:$0xff]
    %v439 = vld [vmem:[%s425 + $0x68] sm:$0xff]
    %v440 = vld [vmem:[%s425 + $0x70] sm:$0xff]
    %v441 = vld [vmem:[%s425 + $0x78] sm:$0xff]
    %v442 = vlaneseq
    %v443 = vshrl.u32 %v442, 7
    %v444 = vsub.s32 4, %v443
    %v445 = vrot.slane %v57, %v444
    %446 = vmatprep.subr.mxu0 0.0
    %447 = vmatpush1.msra.mxu0 %v426
    %448 = vmatprep.subr.mxu0 0.0
    %449 = vmatpush1.msra.mxu0 %v427
    %450 = vmatprep.subr.mxu0 0.0
    %451 = vmatpush1.msra.mxu0 %v428
    %452 = vmatprep.subr.mxu0 0.0
    %453 = vmatpush1.msra.mxu0 %v429
    %454 = vmatprep.subr.mxu0 0.0
    %455 = vmatpush1.msra.mxu0 %v430
    %456 = vmatprep.subr.mxu0 0.0
    %457 = vmatpush1.msra.mxu0 %v431
    %458 = vmatprep.subr.mxu0 0.0
    %459 = vmatpush1.msra.mxu0 %v432
    %460 = vmatprep.subr.mxu0 0.0
    %461 = vmatpush1.msra.mxu0 %v433
    %462 = vmatprep.subr.mxu0 0.0
    %463 = vmatpush1.msra.mxu0 %v434
    %464 = vmatprep.subr.mxu0 0.0
    %465 = vmatpush1.msra.mxu0 %v435
    %466 = vmatprep.subr.mxu0 0.0
    %467 = vmatpush1.msra.mxu0 %v436
    %468 = vmatprep.subr.mxu0 0.0
    %469 = vmatpush1.msra.mxu0 %v437
    %470 = vmatprep.subr.mxu0 0.0
    %471 = vmatpush1.msra.mxu0 %v438
    %472 = vmatprep.subr.mxu0 0.0
    %473 = vmatpush1.msra.mxu0 %v439
    %474 = vmatprep.subr.mxu0 0.0
    %475 = vmatpush1.msra.mxu0 %v440
    %476 = vmatprep.subr.mxu0 0.0
    %477 = vmatpush1.msra.mxu0 %v441
    %478 = vmatprep.subr.mxu0 0.0
    %479 = vmatpush1.msra.mxu0 0.0
    %480 = vmatprep.subr.mxu0 0.0
    %481 = vmatpush1.msra.mxu0 0.0
    %482 = vmatprep.subr.mxu0 0.0
    %483 = vmatpush1.msra.mxu0 0.0
    %484 = vmatprep.subr.mxu0 0.0
    %485 = vmatpush1.msra.mxu0 0.0
    %486 = vmatprep.subr.mxu0 0.0
    %487 = vmatpush1.msra.mxu0 0.0
    %488 = vmatprep.subr.mxu0 0.0
    %489 = vmatpush1.msra.mxu0 0.0
    %490 = vmatprep.subr.mxu0 0.0
    %491 = vmatpush1.msra.mxu0 0.0
    %492 = vmatprep.subr.mxu0 0.0
    %493 = vmatpush1.msra.mxu0 0.0
    %494 = vmatprep.subr.mxu0 0.0
    %495 = vmatpush1.msra.mxu0 0.0
    %496 = vmatprep.subr.mxu0 0.0
    %497 = vmatpush1.msra.mxu0 0.0
    %498 = vmatprep.subr.mxu0 0.0
    %499 = vmatpush1.msra.mxu0 0.0
    %500 = vmatprep.subr.mxu0 0.0
    %501 = vmatpush1.msra.mxu0 0.0
    %502 = vmatprep.subr.mxu0 0.0
    %503 = vmatpush1.msra.mxu0 0.0
    %504 = vmatprep.subr.mxu0 0.0
    %505 = vmatpush1.msra.mxu0 0.0
    %506 = vmatprep.subr.mxu0 0.0
    %507 = vmatpush1.msra.mxu0 0.0
    %508 = vmatprep.subr.mxu0 0.0
    %509 = vmatpush1.msra.mxu0 0.0
    %510 = vmatprep.mubr.f32.mxu0 0.0
    %511 = vmatmul.mubr.f32.gmra.mrb[0].mxu0 %v424
    %v512 = vpop.f32.mrb[0].mxu0
    %v513 = vadd.f32 %v445, %v512
    %v514 = vpop.f32.mrb[0].mxu0
    %515 = vdwg.mxu0
    %v516 = vmax.f32 %v513, 0.0
    %s517 = scalar_lea.vmem [#allocation7], 640
    %v518 = vld [vmem:[%s517] sm:$0xff]
    %v519 = vld [vmem:[%s517 + $0x8] sm:$0xff]
    %v520 = vld [vmem:[%s517 + $0x10] sm:$0xff]
    %v521 = vld [vmem:[%s517 + $0x18] sm:$0xff]
    %v522 = vld [vmem:[%s517 + $0x20] sm:$0xff]
    %v523 = vld [vmem:[%s517 + $0x28] sm:$0xff]
    %v524 = vld [vmem:[%s517 + $0x30] sm:$0xff]
    %v525 = vld [vmem:[%s517 + $0x38] sm:$0xff]
    %v526 = vld [vmem:[%s517 + $0x40] sm:$0xff]
    %v527 = vld [vmem:[%s517 + $0x48] sm:$0xff]
    %v528 = vld [vmem:[%s517 + $0x50] sm:$0xff]
    %v529 = vld [vmem:[%s517 + $0x58] sm:$0xff]
    %v530 = vld [vmem:[%s517 + $0x60] sm:$0xff]
    %v531 = vld [vmem:[%s517 + $0x68] sm:$0xff]
    %v532 = vld [vmem:[%s517 + $0x70] sm:$0xff]
    %v533 = vld [vmem:[%s517 + $0x78] sm:$0xff]
    %v534 = vlaneseq
    %v535 = vshrl.u32 %v534, 7
    %v536 = vsub.s32 5, %v535
    %v537 = vrot.slane %v57, %v536
    %538 = vmatprep.subr.mxu0 0.0
    %539 = vmatpush1.msra.mxu0 %v518
    %540 = vmatprep.subr.mxu0 0.0
    %541 = vmatpush1.msra.mxu0 %v519
    %542 = vmatprep.subr.mxu0 0.0
    %543 = vmatpush1.msra.mxu0 %v520
    %544 = vmatprep.subr.mxu0 0.0
    %545 = vmatpush1.msra.mxu0 %v521
    %546 = vmatprep.subr.mxu0 0.0
    %547 = vmatpush1.msra.mxu0 %v522
    %548 = vmatprep.subr.mxu0 0.0
    %549 = vmatpush1.msra.mxu0 %v523
    %550 = vmatprep.subr.mxu0 0.0
    %551 = vmatpush1.msra.mxu0 %v524
    %552 = vmatprep.subr.mxu0 0.0
    %553 = vmatpush1.msra.mxu0 %v525
    %554 = vmatprep.subr.mxu0 0.0
    %555 = vmatpush1.msra.mxu0 %v526
    %556 = vmatprep.subr.mxu0 0.0
    %557 = vmatpush1.msra.mxu0 %v527
    %558 = vmatprep.subr.mxu0 0.0
    %559 = vmatpush1.msra.mxu0 %v528
    %560 = vmatprep.subr.mxu0 0.0
    %561 = vmatpush1.msra.mxu0 %v529
    %562 = vmatprep.subr.mxu0 0.0
    %563 = vmatpush1.msra.mxu0 %v530
    %564 = vmatprep.subr.mxu0 0.0
    %565 = vmatpush1.msra.mxu0 %v531
    %566 = vmatprep.subr.mxu0 0.0
    %567 = vmatpush1.msra.mxu0 %v532
    %568 = vmatprep.subr.mxu0 0.0
    %569 = vmatpush1.msra.mxu0 %v533
    %570 = vmatprep.subr.mxu0 0.0
    %571 = vmatpush1.msra.mxu0 0.0
    %572 = vmatprep.subr.mxu0 0.0
    %573 = vmatpush1.msra.mxu0 0.0
    %574 = vmatprep.subr.mxu0 0.0
    %575 = vmatpush1.msra.mxu0 0.0
    %576 = vmatprep.subr.mxu0 0.0
    %577 = vmatpush1.msra.mxu0 0.0
    %578 = vmatprep.subr.mxu0 0.0
    %579 = vmatpush1.msra.mxu0 0.0
    %580 = vmatprep.subr.mxu0 0.0
    %581 = vmatpush1.msra.mxu0 0.0
    %582 = vmatprep.subr.mxu0 0.0
    %583 = vmatpush1.msra.mxu0 0.0
    %584 = vmatprep.subr.mxu0 0.0
    %585 = vmatpush1.msra.mxu0 0.0
    %586 = vmatprep.subr.mxu0 0.0
    %587 = vmatpush1.msra.mxu0 0.0
    %588 = vmatprep.subr.mxu0 0.0
    %589 = vmatpush1.msra.mxu0 0.0
    %590 = vmatprep.subr.mxu0 0.0
    %591 = vmatpush1.msra.mxu0 0.0
    %592 = vmatprep.subr.mxu0 0.0
    %593 = vmatpush1.msra.mxu0 0.0
    %594 = vmatprep.subr.mxu0 0.0
    %595 = vmatpush1.msra.mxu0 0.0
    %596 = vmatprep.subr.mxu0 0.0
    %597 = vmatpush1.msra.mxu0 0.0
    %598 = vmatprep.subr.mxu0 0.0
    %599 = vmatpush1.msra.mxu0 0.0
    %600 = vmatprep.subr.mxu0 0.0
    %601 = vmatpush1.msra.mxu0 0.0
    %602 = vmatprep.mubr.f32.mxu0 0.0
    %603 = vmatmul.mubr.f32.gmra.mrb[0].mxu0 %v516
    %v604 = vpop.f32.mrb[0].mxu0
    %v605 = vadd.f32 %v537, %v604
    %v606 = vpop.f32.mrb[0].mxu0
    %607 = vdwg.mxu0
    %s608 = scalar_lea.vmem [#allocation7], 768
    %v609 = vld [vmem:[%s608] sm:$0xff]
    %v610 = vld [vmem:[%s608 + $0x8] sm:$0xff]
    %v611 = vld [vmem:[%s608 + $0x10] sm:$0xff]
    %v612 = vld [vmem:[%s608 + $0x18] sm:$0xff]
    %v613 = vld [vmem:[%s608 + $0x20] sm:$0xff]
    %v614 = vld [vmem:[%s608 + $0x28] sm:$0xff]
    %v615 = vld [vmem:[%s608 + $0x30] sm:$0xff]
    %v616 = vld [vmem:[%s608 + $0x38] sm:$0xff]
    %v617 = vld [vmem:[%s608 + $0x40] sm:$0xff]
    %v618 = vld [vmem:[%s608 + $0x48] sm:$0xff]
    %v619 = vld [vmem:[%s608 + $0x50] sm:$0xff]
    %v620 = vld [vmem:[%s608 + $0x58] sm:$0xff]
    %v621 = vld [vmem:[%s608 + $0x60] sm:$0xff]
    %v622 = vld [vmem:[%s608 + $0x68] sm:$0xff]
    %v623 = vld [vmem:[%s608 + $0x70] sm:$0xff]
    %v624 = vld [vmem:[%s608 + $0x78] sm:$0xff]
    %625 = vmatprep.subr.mxu0 0.0
    %626 = vmatpush1.msra.mxu0 %v609
    %627 = vmatprep.subr.mxu0 0.0
    %628 = vmatpush1.msra.mxu0 %v610
    %629 = vmatprep.subr.mxu0 0.0
    %630 = vmatpush1.msra.mxu0 %v611
    %631 = vmatprep.subr.mxu0 0.0
    %632 = vmatpush1.msra.mxu0 %v612
    %633 = vmatprep.subr.mxu0 0.0
    %634 = vmatpush1.msra.mxu0 %v613
    %635 = vmatprep.subr.mxu0 0.0
    %636 = vmatpush1.msra.mxu0 %v614
    %637 = vmatprep.subr.mxu0 0.0
    %638 = vmatpush1.msra.mxu0 %v615
    %639 = vmatprep.subr.mxu0 0.0
    %640 = vmatpush1.msra.mxu0 %v616
    %641 = vmatprep.subr.mxu0 0.0
    %642 = vmatpush1.msra.mxu0 %v617
    %643 = vmatprep.subr.mxu0 0.0
    %644 = vmatpush1.msra.mxu0 %v618
    %645 = vmatprep.subr.mxu0 0.0
    %646 = vmatpush1.msra.mxu0 %v619
    %647 = vmatprep.subr.mxu0 0.0
    %648 = vmatpush1.msra.mxu0 %v620
    %649 = vmatprep.subr.mxu0 0.0
    %650 = vmatpush1.msra.mxu0 %v621
    %651 = vmatprep.subr.mxu0 0.0
    %652 = vmatpush1.msra.mxu0 %v622
    %653 = vmatprep.subr.mxu0 0.0
    %654 = vmatpush1.msra.mxu0 %v623
    %655 = vmatprep.subr.mxu0 0.0
    %656 = vmatpush1.msra.mxu0 %v624
    %657 = vmatprep.subr.mxu0 0.0
    %658 = vmatpush1.msra.mxu0 0.0
    %659 = vmatprep.subr.mxu0 0.0
    %660 = vmatpush1.msra.mxu0 0.0
    %661 = vmatprep.subr.mxu0 0.0
    %662 = vmatpush1.msra.mxu0 0.0
    %663 = vmatprep.subr.mxu0 0.0
    %664 = vmatpush1.msra.mxu0 0.0
    %665 = vmatprep.subr.mxu0 0.0
    %666 = vmatpush1.msra.mxu0 0.0
    %667 = vmatprep.subr.mxu0 0.0
    %668 = vmatpush1.msra.mxu0 0.0
    %669 = vmatprep.subr.mxu0 0.0
    %670 = vmatpush1.msra.mxu0 0.0
    %671 = vmatprep.subr.mxu0 0.0
    %672 = vmatpush1.msra.mxu0 0.0
    %673 = vmatprep.subr.mxu0 0.0
    %674 = vmatpush1.msra.mxu0 0.0
    %675 = vmatprep.subr.mxu0 0.0
    %676 = vmatpush1.msra.mxu0 0.0
    %677 = vmatprep.subr.mxu0 0.0
    %678 = vmatpush1.msra.mxu0 0.0
    %679 = vmatprep.subr.mxu0 0.0
    %680 = vmatpush1.msra.mxu0 0.0
    %681 = vmatprep.subr.mxu0 0.0
    %682 = vmatpush1.msra.mxu0 0.0
    %683 = vmatprep.subr.mxu0 0.0
    %684 = vmatpush1.msra.mxu0 0.0
    %685 = vmatprep.subr.mxu0 0.0
    %686 = vmatpush1.msra.mxu0 0.0
    %687 = vmatprep.subr.mxu0 0.0
    %688 = vmatpush1.msra.mxu0 0.0
    %689 = vmatprep.mubr.f32.mxu0 0.0
    %690 = vmatmul.mubr.f32.gmra.mrb[0].mxu0 %v329
    %v691 = vpop.f32.mrb[0].mxu0
    %v692 = vadd.f32 0.0, %v691
    %v693 = vpop.f32.mrb[0].mxu0
    %694 = vdwg.mxu0
    %v695 = vadd.f32 %v605, %v692
    %696 = vst [vmem:[#allocation8] sm:$0xff] %v695
    // Predicated region
    $region30: #{tpu_custom_call.1} parent=1 // pred_check
      _
    $region31: #{tpu_custom_call.1} parent=1 // pred_check_branch
      %698 = sbr.rel (0) target = $region33
    $region32: #{tpu_custom_call.1} parent=1 // pred_region
      %s700 = ssub.s32 128, 128
      %701 = vsyncadd [#allocation4], %s700
      %s703 = sshll.u32 [#allocation8], 4
      %s704 = int_to_ptr.vmem [resolvable:$true] %s703
      %706 = dma.vmem_to_hbm [thread:$0]  %s704, 128, %s4, [#allocation4]
    $region33: #{tpu_custom_call.1} parent=1 // pred_fallthru
      _
    // Predicated region
    $region34: #{tpu_custom_call.1} parent=1 // pred_check
      _
    $region35: #{tpu_custom_call.1} parent=1 // pred_check_branch
      %708 = sbr.rel (0) target = $region37
    $region36: #{tpu_custom_call.1} parent=1 // pred_region
      %709 = dma.done [#allocation4], 128
    $region37: #{tpu_custom_call.1} parent=1 // pred_fallthru
      _
    %710 = vsyncpa [#allocation3], 1
    %711 = vsyncpa [#allocation6], 1
    %712 = vsyncpa [#allocation4], 1

</llo_original>
